<compile_context>
chip_gen: v7x
topology: tpu7x:2x2x1
jax: 0.10.0
libtpu: 0.0.40
codegen_flags: <defaults>
</compile_context>

<pallas_src>
import numpy as np
import jax
import jax.numpy as jnp
from jax.experimental import pallas as pl
from jax.experimental.pallas import tpu as pltpu


# ----------------------------------------------------------------------------
# Deterministic Gabor filter bank construction (mirrors the module's __init__).
# ----------------------------------------------------------------------------
def gabor_filter(pos, sigma_x, sigma_y, sf, phase, theta, res, xlim, ylim):
    xs = np.linspace(xlim[0], xlim[1], res[0])
    ys = np.linspace(ylim[0], ylim[1], res[1])
    X, Y = np.meshgrid(xs, ys, indexing="ij")
    Xc = X - pos[0]
    Yc = Y - pos[1]
    xr = Xc * np.cos(theta) + Yc * np.sin(theta)
    yr = -Xc * np.sin(theta) + Yc * np.cos(theta)
    envelope = np.exp(-(xr ** 2 / (2.0 * sigma_x ** 2) + yr ** 2 / (2.0 * sigma_y ** 2)))
    carrier = np.cos(2.0 * np.pi * sf * xr + phase)
    return (envelope * carrier).astype(np.float32)


def build_rotation_invariant_gabor_filters(
    pos=(0.0, 0.0), sigma_x=0.3, sigma_y=0.3, sf=1.0, phase=0.0,
    n_thetas=180, res=(30, 30), xlim=(-1.0, 1.0), ylim=(-1.0, 1.0),
    max_angle=2.0 * np.pi,
):
    thetas = np.linspace(0.0, max_angle, n_thetas + 1)[:-1]
    bank = np.stack(
        [gabor_filter(pos, sigma_x, sigma_y, sf, phase, th, res, xlim, ylim)
         for th in thetas],
        axis=0,
    )  # (N, H, W)
    return bank[:, None, :, :].astype(np.float32)  # (N, 1, H, W)


def prepare_filter_matrix(filters_nchw, compute_dtype=np.float32):
    """Static, build-time filter prep (pure numpy, no XLA ops at call time).

    (N, C, H, W) -> (K, Np) with:
      * K = C*H*W  (contraction dim; left unpadded — it maps to MXU rows)
      * Np = N rounded up to a multiple of 128 (lane-dense stationary RHS),
        padded by DUPLICATING existing filter rows -> max over N is unchanged
        (zero rows would clip negative maxima — do NOT use zero padding).
      * pre-transposed so the kernel does a clean (TB,K) @ (K,Np) with no .T.
      * pre-cast to the desired compute dtype (f32 default, bf16 optional).
    """
    N = filters_nchw.shape[0]
    K = int(np.prod(filters_nchw.shape[1:]))
    f_nk = np.asarray(filters_nchw, dtype=np.float32).reshape(N, K)

    Np = max(128, ((N + 127) // 128) * 128)
    if Np != N:
        dup_idx = np.arange(Np - N) % N   # duplicate existing rows (max-invariant)
        f_nk = np.concatenate([f_nk, f_nk[dup_idx]], axis=0)

    f_kn = np.ascontiguousarray(f_nk.T).astype(compute_dtype)  # (K, Np)
    return f_kn


# ----------------------------------------------------------------------------
# Pallas kernel: scores = X_tile @ F (stationary RHS on the MXU), then max.
# ----------------------------------------------------------------------------
def _make_rot_inv_gabor_kernel(n_lanes, compute_dtype):
    n_groups = n_lanes // 128  # Np is always a multiple of 128 by construction

    def kernel(x_ref, f_ref, o_ref):
        # x_ref: (TB, K) in x's native HBM dtype; f_ref: (K, Np) pre-cast;
        # o_ref: (TB, 1) f32.
        x = x_ref[...]
        if x.dtype != compute_dtype:
            x = x.astype(compute_dtype)          # in-kernel cast: HBM streams once
        scores = jnp.dot(x, f_ref[...], preferred_element_type=jnp.float32)

        # VPU pre-fold across 128-lane chunks (vreg-aligned slices -> no lane
        # movement), then a single 128-lane XLU reduce.  Keeps the XLU slot
        # from contending with MXU pushes.
        folded = scores[:, 0:128]
        for j in range(1, n_groups):
            folded = jnp.maximum(folded, scores[:, j * 128:(j + 1) * 128])
        o_ref[...] = jnp.max(folded, axis=1, keepdims=True).astype(o_ref.dtype)

    return kernel


def _choose_batch_tile(B, tile_b):
    """Pick TB: multiple of 8 (or == B) per the (8,128) rule; >=2 grid tiles
    when possible so v7x's two TensorCores both get work."""
    if B > tile_b:
        return tile_b
    half = -(-B // 2)                 # cdiv(B, 2)
    tb = ((half + 7) // 8) * 8        # round up to sublane multiple
    if tb >= B:
        return B                      # too small to split legally; single tile
    return tb


def rotation_invariant_gabor(x, f_kn, *, tile_b=2048, compute_dtype=jnp.float32):
    """x: (B, C, H, W); f_kn: pre-built (K, Np) filter matrix -> (B,) float32.

    For v5e/v7x production runs, build f_kn with compute_dtype=bf16 and pass
    compute_dtype=jnp.bfloat16 here (x is cast to bf16 INSIDE the kernel, MXU
    accumulates in f32).  Validate max-winner stability at a looser tolerance
    before enabling — near-ties can flip under bf16.
    """
    B = x.shape[0]
    K = int(np.prod(x.shape[1:]))
    Kf, Np = f_kn.shape
    assert Kf == K, "channel/spatial dims of x must match the filter bank"

    # Only reshape; NO dtype cast here (the wrapper cast doubled HBM traffic).
    x_flat = x.reshape(B, K)

    TB = _choose_batch_tile(B, tile_b)
    grid = (pl.cdiv(B, TB),)

    # VMEM budget: double-buffered x tile (+lane padding) + resident filters
    # (still double-allocated by default) + scores + output, with headroom.
    k_lanes = ((K + 127) // 128) * 128
    k_sub = ((K + 7) // 8) * 8
    x_bytes = 2 * TB * k_lanes * jnp.dtype(x.dtype).itemsize
    f_bytes = 2 * k_sub * Np * jnp.dtype(f_kn.dtype).itemsize
    misc_bytes = TB * Np * 4 + 2 * TB * 128 * 4
    needed = int(1.5 * (x_bytes + f_bytes + misc_bytes)) + (4 << 20)
    vmem_limit = min(max(needed, 32 << 20), 64 << 20)

    cost = pl.CostEstimate(
        flops=2 * B * K * Np,
        transcendentals=0,
        bytes_accessed=(B * K * jnp.dtype(x.dtype).itemsize
                        + K * Np * jnp.dtype(f_kn.dtype).itemsize
                        + B * 4),
    )

    kernel = _make_rot_inv_gabor_kernel(Np, jnp.dtype(compute_dtype))

    out = pl.pallas_call(
        kernel,
        out_shape=jax.ShapeDtypeStruct((B, 1), jnp.float32),
        grid=grid,
        in_specs=[
            pl.BlockSpec((TB, K), lambda i: (i, 0)),   # K == full dim -> legal
            # Filters stay resident (constant index_map).
            # TODO(synk): if VMEM gets tight at very large TB, single-buffer this
            # spec (pipeline_mode=pl.Buffered(1)) after confirming Mosaic accepts it.
            pl.BlockSpec((K, Np), lambda i: (0, 0)),
        ],
        out_specs=pl.BlockSpec((TB, 1), lambda i: (i, 0)),
        compiler_params=pltpu.CompilerParams(
            dimension_semantics=("parallel",),          # independent batch tiles
            vmem_limit_bytes=vmem_limit,
        ),
        cost_estimate=cost,
    )(x_flat, f_kn)
    return out[:, 0]


if __name__ == "__main__":
    # Small, deterministic example consistent with the module defaults:
    # filters are (n_thetas=180, 1, 30, 30) so the input must have C=1, H=W=30.
    B, C, H, W = 2, 1, 30, 30
    key = jax.random.PRNGKey(0)
    x = jax.random.normal(key, (B, C, H, W), dtype=jnp.float32)

    filters_np = build_rotation_invariant_gabor_filters(
        n_thetas=180, res=(H, W)
    )  # (180, 1, 30, 30)

    # One-time static filter prep in numpy (reshape + max-invariant N pad + transpose).
    f_kn = jnp.asarray(prepare_filter_matrix(filters_np))  # (900, 256) f32

    out = rotation_invariant_gabor(x, f_kn)
    out = jax.block_until_ready(out)

    # Pure-JAX reference against the ORIGINAL (unpadded) filter bank.
    filters = jnp.asarray(filters_np)
    ref = jnp.max(jnp.einsum("bcxy,ncxy->bn", x, filters), axis=1)
    np.testing.assert_allclose(np.asarray(out), np.asarray(ref), rtol=1e-5, atol=1e-5)

    print("KERNEL_OK")
</pallas_src>

<mosaic_0001>
module attributes {stable_mosaic.version = 11 : i64} {
  func.func @kernel(%arg0: i32, %arg1: memref<2x900xf32, #tpu.memory_space<vmem>>, %arg2: memref<900x256xf32, #tpu.memory_space<vmem>>, %arg3: memref<2x1xf32, #tpu.memory_space<vmem>>) attributes {dimension_semantics = [#tpu.dimension_semantics<parallel>], iteration_bounds = array<i64: 1>, scalar_prefetch = 0 : i64, scratch_operands = 0 : i64, tpu.core_type = #tpu.core_type<tc>, window_params = [{transform_indices = @transform_0, window_bounds = array<i64: 2, 900>}, {pipeline_mode = #tpu.pipeline_mode<synchronous>, transform_indices = @transform_1, window_bounds = array<i64: 900, 256>}, {transform_indices = @transform_2, window_bounds = array<i64: 2, 1>}]} {
    %c0 = arith.constant 0 : index
    %c0_0 = arith.constant 0 : index
    %0 = vector.load %arg1[%c0, %c0_0] : memref<2x900xf32, #tpu.memory_space<vmem>>, vector<2x900xf32>
    %c0_1 = arith.constant 0 : index
    %c0_2 = arith.constant 0 : index
    %1 = vector.load %arg2[%c0_1, %c0_2] : memref<900x256xf32, #tpu.memory_space<vmem>>, vector<900x256xf32>
    %cst = arith.constant dense<0.000000e+00> : vector<2x256xf32>
    %2 = tpu.matmul %0, %1, %cst {dimension_numbers = #tpu.dot_dimension_numbers<[1], [0], [0], [1], [0, 0, 1, 1], [], []>} : vector<2x900xf32>, vector<900x256xf32>, vector<2x256xf32> -> vector<2x256xf32>
    %3 = vector.extract_strided_slice %2 {offsets = [0, 0], sizes = [2, 128], strides = [1, 1]} : vector<2x256xf32> to vector<2x128xf32>
    %4 = vector.extract_strided_slice %2 {offsets = [0, 128], sizes = [2, 128], strides = [1, 1]} : vector<2x256xf32> to vector<2x128xf32>
    %5 = arith.maximumf %3, %4 : vector<2x128xf32>
    %cst_3 = arith.constant dense<0xFF800000> : vector<2xf32>
    %6 = vector.multi_reduction <maximumf>, %5, %cst_3 [1] : vector<2x128xf32> to vector<2xf32>
    %7 = vector.shape_cast %6 : vector<2xf32> to vector<2x1xf32>
    %c0_4 = arith.constant 0 : index
    %c0_5 = arith.constant 0 : index
    %8 = vector.load %arg3[%c0_4, %c0_5] : memref<2x1xf32, #tpu.memory_space<vmem>>, vector<2x1xf32>
    tpu.vector_store %arg3[%c0_4, %c0_5], %7 {strides = array<i32>} : memref<2x1xf32, #tpu.memory_space<vmem>>, vector<2x1xf32>,
    return
  }
  func.func @transform_0(%arg0: i32) -> (i32, i32) {
    %c0_i32 = arith.constant 0 : i32
    %c0_i32_0 = arith.constant 0 : i32
    return %arg0, %c0_i32 : i32, i32
  }
  func.func @transform_1(%arg0: i32) -> (i32, i32) {
    %c0_i32 = arith.constant 0 : i32
    %c0_i32_0 = arith.constant 0 : i32
    %c0_i32_1 = arith.constant 0 : i32
    return %c0_i32, %c0_i32_0 : i32, i32
  }
  func.func @transform_2(%arg0: i32) -> (i32, i32) {
    %c0_i32 = arith.constant 0 : i32
    %c0_i32_0 = arith.constant 0 : i32
    return %arg0, %c0_i32 : i32, i32
  }
}

</mosaic_0001>

<llo_original>
// kernel: tpu_custom_call.1
$region0: #{tpu_custom_call.1}
  #allocation0 [shape = 'u32[]', space=smem, size = 0x4, offset = 0x4, fixed_abs, tag = 'smem constant byte address 0x4 - core index']
  #allocation1 [shape = 'u32[144,128]{1,0:T(1,128)}', space=vmem, size = 0x12000, scoped, tag = 'internal scratch']
  %s0 = inlined_call_operand.hbm [shape: f32[2,900], index: 0, kind: input, shape index: {}]
  %s1 = inlined_call_operand.hbm [shape: f32[900,256], index: 1, kind: input, shape index: {}]
  %s2 = inlined_call_operand.vmem [shape: f32[2,1], index: 2, kind: output, shape index: {}]
  %s3 = sld [smem:[#allocation0]]
  $region26: #{tpu_custom_call.1} parent=0
    _
  %s5 = ssub.s32 1, %s3
  %s6 = scalar_select 0, %s5, %s3
  $region1: #{tpu_custom_call.1} parent=0
    #allocation2 [shape = 'u8[8192]{0}', space=vmem, size = 0x2000, scoped, tag = 'input window, operand 0, single buffered']
    #allocation3 [shape = 's32[1]{0}', space=sflag, size = 0x4, scoped, tag = 'scoped memory for tpu_custom_call.1']
    #allocation4 [shape = 'u8[925696]{0}', space=vmem, size = 0xe2000, scoped, tag = 'input window, operand 1, single buffered']
    #allocation5 [shape = 's32[1]{0}', space=sflag, size = 0x4, scoped, tag = 'scoped memory for tpu_custom_call.1']
    %7 = vsyncpa [#allocation3], 0
    %8 = vsyncpa [#allocation5], 0
    // Predicated region
    $region2: #{tpu_custom_call.1} parent=1 // pred_check
      _
    $region3: #{tpu_custom_call.1} parent=1 // pred_check_branch
      %10 = sbr.rel (0) target = $region5
    $region4: #{tpu_custom_call.1} parent=1 // pred_region
      %s12 = ssub.s32 256, 256
      %13 = vsyncadd [#allocation3], %s12
      %s15 = sshll.u32 [#allocation2], 4
      %s16 = int_to_ptr.vmem [resolvable:$true] %s15
      %18 = dma.hbm_to_vmem [thread:$0]  %s0, 256, %s16, [#allocation3]
    $region5: #{tpu_custom_call.1} parent=1 // pred_fallthru
      _
    // Predicated region
    $region6: #{tpu_custom_call.1} parent=1 // pred_check
      _
    $region7: #{tpu_custom_call.1} parent=1 // pred_check_branch
      %20 = sbr.rel (0) target = $region9
    $region8: #{tpu_custom_call.1} parent=1 // pred_region
      %s22 = ssub.s32 28928, 28928
      %23 = vsyncadd [#allocation5], %s22
      %s24 = sshll.u32 [#allocation4], 4
      %s25 = int_to_ptr.vmem [resolvable:$true] %s24
      %30 = dma.hbm_to_vmem [thread:$0]  %s1, 28928, %s25, [#allocation5], 256, 256, 16
    $region9: #{tpu_custom_call.1} parent=1 // pred_fallthru
      _
    // Predicated region
    $region10: #{tpu_custom_call.1} parent=1 // pred_check
      _
    $region11: #{tpu_custom_call.1} parent=1 // pred_check_branch
      %32 = sbr.rel (0) target = $region13
    $region12: #{tpu_custom_call.1} parent=1 // pred_region
      %33 = dma.done [#allocation3], 256
    $region13: #{tpu_custom_call.1} parent=1 // pred_fallthru
      _
    // Predicated region
    $region14: #{tpu_custom_call.1} parent=1 // pred_check
      _
    $region15: #{tpu_custom_call.1} parent=1 // pred_check_branch
      %35 = sbr.rel (0) target = $region17
    $region16: #{tpu_custom_call.1} parent=1 // pred_region
      %36 = dma.done [#allocation5], 28928
    $region17: #{tpu_custom_call.1} parent=1 // pred_fallthru
      _
    %v37 = vld [vmem:[#allocation2] sm:$0xff]
    %v38 = vld [vmem:[#allocation2 + $0x8] sm:$0xff]
    %v39 = vld [vmem:[#allocation4] sm:$0xff]
    %v40 = vld [vmem:[#allocation4 + $0x8] sm:$0xff]
    %v41 = vld [vmem:[#allocation4 + $0x10] sm:$0xff]
    %v42 = vld [vmem:[#allocation4 + $0x18] sm:$0xff]
    %v43 = vld [vmem:[#allocation4 + $0x20] sm:$0xff]
    %v44 = vld [vmem:[#allocation4 + $0x28] sm:$0xff]
    %v45 = vld [vmem:[#allocation4 + $0x30] sm:$0xff]
    %v46 = vld [vmem:[#allocation4 + $0x38] sm:$0xff]
    %v47 = vld [vmem:[#allocation4 + $0x40] sm:$0xff]
    %v48 = vld [vmem:[#allocation4 + $0x48] sm:$0xff]
    %v49 = vld [vmem:[#allocation4 + $0x50] sm:$0xff]
    %v50 = vld [vmem:[#allocation4 + $0x58] sm:$0xff]
    %v51 = vld [vmem:[#allocation4 + $0x60] sm:$0xff]
    %v52 = vld [vmem:[#allocation4 + $0x68] sm:$0xff]
    %v53 = vld [vmem:[#allocation4 + $0x70] sm:$0xff]
    %v54 = vld [vmem:[#allocation4 + $0x78] sm:$0xff]
    %v55 = vld [vmem:[#allocation4 + $0x80] sm:$0xff]
    %v56 = vld [vmem:[#allocation4 + $0x88] sm:$0xff]
    %v57 = vld [vmem:[#allocation4 + $0x90] sm:$0xff]
    %v58 = vld [vmem:[#allocation4 + $0x98] sm:$0xff]
    %v59 = vld [vmem:[#allocation4 + $0xa0] sm:$0xff]
    %v60 = vld [vmem:[#allocation4 + $0xa8] sm:$0xff]
    %v61 = vld [vmem:[#allocation4 + $0xb0] sm:$0xff]
    %v62 = vld [vmem:[#allocation4 + $0xb8] sm:$0xff]
    %v63 = vld [vmem:[#allocation4 + $0xc0] sm:$0xff]
    %v64 = vld [vmem:[#allocation4 + $0xc8] sm:$0xff]
    %v65 = vld [vmem:[#allocation4 + $0xd0] sm:$0xff]
    %v66 = vld [vmem:[#allocation4 + $0xd8] sm:$0xff]
    %v67 = vld [vmem:[#allocation4 + $0xe0] sm:$0xff]
    %v68 = vld [vmem:[#allocation4 + $0xe8] sm:$0xff]
    %v69 = vld [vmem:[#allocation4 + $0xf0] sm:$0xff]
    %v70 = vld [vmem:[#allocation4 + $0xf8] sm:$0xff]
    %v71 = vld [vmem:[#allocation4 + $0x100] sm:$0xff]
    %v72 = vld [vmem:[#allocation4 + $0x108] sm:$0xff]
    %v73 = vld [vmem:[#allocation4 + $0x110] sm:$0xff]
    %v74 = vld [vmem:[#allocation4 + $0x118] sm:$0xff]
    %v75 = vld [vmem:[#allocation4 + $0x120] sm:$0xff]
    %v76 = vld [vmem:[#allocation4 + $0x128] sm:$0xff]
    %v77 = vld [vmem:[#allocation4 + $0x130] sm:$0xff]
    %v78 = vld [vmem:[#allocation4 + $0x138] sm:$0xff]
    %v79 = vld [vmem:[#allocation4 + $0x140] sm:$0xff]
    %v80 = vld [vmem:[#allocation4 + $0x148] sm:$0xff]
    %v81 = vld [vmem:[#allocation4 + $0x150] sm:$0xff]
    %v82 = vld [vmem:[#allocation4 + $0x158] sm:$0xff]
    %v83 = vld [vmem:[#allocation4 + $0x160] sm:$0xff]
    %v84 = vld [vmem:[#allocation4 + $0x168] sm:$0xff]
    %v85 = vld [vmem:[#allocation4 + $0x170] sm:$0xff]
    %v86 = vld [vmem:[#allocation4 + $0x178] sm:$0xff]
    %v87 = vld [vmem:[#allocation4 + $0x180] sm:$0xff]
    %v88 = vld [vmem:[#allocation4 + $0x188] sm:$0xff]
    %v89 = vld [vmem:[#allocation4 + $0x190] sm:$0xff]
    %v90 = vld [vmem:[#allocation4 + $0x198] sm:$0xff]
    %v91 = vld [vmem:[#allocation4 + $0x1a0] sm:$0xff]
    %v92 = vld [vmem:[#allocation4 + $0x1a8] sm:$0xff]
    %v93 = vld [vmem:[#allocation4 + $0x1b0] sm:$0xff]
    %v94 = vld [vmem:[#allocation4 + $0x1b8] sm:$0xff]
    %v95 = vld [vmem:[#allocation4 + $0x1c0] sm:$0xff]
    %v96 = vld [vmem:[#allocation4 + $0x1c8] sm:$0xff]
    %v97 = vld [vmem:[#allocation4 + $0x1d0] sm:$0xff]
    %v98 = vld [vmem:[#allocation4 + $0x1d8] sm:$0xff]
    %v99 = vld [vmem:[#allocation4 + $0x1e0] sm:$0xff]
    %v100 = vld [vmem:[#allocation4 + $0x1e8] sm:$0xff]
    %v101 = vld [vmem:[#allocation4 + $0x1f0] sm:$0xff]
    %v102 = vld [vmem:[#allocation4 + $0x1f8] sm:$0xff]
    %v103 = vld [vmem:[#allocation4 + $0x200] sm:$0xff]
    %v104 = vld [vmem:[#allocation4 + $0x208] sm:$0xff]
    %v105 = vld [vmem:[#allocation4 + $0x210] sm:$0xff]
    %v106 = vld [vmem:[#allocation4 + $0x218] sm:$0xff]
    %v107 = vld [vmem:[#allocation4 + $0x220] sm:$0xff]
    %v108 = vld [vmem:[#allocation4 + $0x228] sm:$0xff]
    %v109 = vld [vmem:[#allocation4 + $0x230] sm:$0xff]
    %v110 = vld [vmem:[#allocation4 + $0x238] sm:$0xff]
    %v111 = vld [vmem:[#allocation4 + $0x240] sm:$0xff]
    %v112 = vld [vmem:[#allocation4 + $0x248] sm:$0xff]
    %v113 = vld [vmem:[#allocation4 + $0x250] sm:$0xff]
    %v114 = vld [vmem:[#allocation4 + $0x258] sm:$0xff]
    %v115 = vld [vmem:[#allocation4 + $0x260] sm:$0xff]
    %v116 = vld [vmem:[#allocation4 + $0x268] sm:$0xff]
    %v117 = vld [vmem:[#allocation4 + $0x270] sm:$0xff]
    %v118 = vld [vmem:[#allocation4 + $0x278] sm:$0xff]
    %v119 = vld [vmem:[#allocation4 + $0x280] sm:$0xff]
    %v120 = vld [vmem:[#allocation4 + $0x288] sm:$0xff]
    %v121 = vld [vmem:[#allocation4 + $0x290] sm:$0xff]
    %v122 = vld [vmem:[#allocation4 + $0x298] sm:$0xff]
    %v123 = vld [vmem:[#allocation4 + $0x2a0] sm:$0xff]
    %v124 = vld [vmem:[#allocation4 + $0x2a8] sm:$0xff]
    %v125 = vld [vmem:[#allocation4 + $0x2b0] sm:$0xff]
    %v126 = vld [vmem:[#allocation4 + $0x2b8] sm:$0xff]
    %v127 = vld [vmem:[#allocation4 + $0x2c0] sm:$0xff]
    %v128 = vld [vmem:[#allocation4 + $0x2c8] sm:$0xff]
    %v129 = vld [vmem:[#allocation4 + $0x2d0] sm:$0xff]
    %v130 = vld [vmem:[#allocation4 + $0x2d8] sm:$0xff]
    %v131 = vld [vmem:[#allocation4 + $0x2e0] sm:$0xff]
    %v132 = vld [vmem:[#allocation4 + $0x2e8] sm:$0xff]
    %v133 = vld [vmem:[#allocation4 + $0x2f0] sm:$0xff]
    %v134 = vld [vmem:[#allocation4 + $0x2f8] sm:$0xff]
    %v135 = vld [vmem:[#allocation4 + $0x300] sm:$0xff]
    %v136 = vld [vmem:[#allocation4 + $0x308] sm:$0xff]
    %v137 = vld [vmem:[#allocation4 + $0x310] sm:$0xff]
    %v138 = vld [vmem:[#allocation4 + $0x318] sm:$0xff]
    %v139 = vld [vmem:[#allocation4 + $0x320] sm:$0xff]
    %v140 = vld [vmem:[#allocation4 + $0x328] sm:$0xff]
    %v141 = vld [vmem:[#allocation4 + $0x330] sm:$0xff]
    %v142 = vld [vmem:[#allocation4 + $0x338] sm:$0xff]
    %v143 = vld [vmem:[#allocation4 + $0x340] sm:$0xff]
    %v144 = vld [vmem:[#allocation4 + $0x348] sm:$0xff]
    %v145 = vld [vmem:[#allocation4 + $0x350] sm:$0xff]
    %v146 = vld [vmem:[#allocation4 + $0x358] sm:$0xff]
    %v147 = vld [vmem:[#allocation4 + $0x360] sm:$0xff]
    %v148 = vld [vmem:[#allocation4 + $0x368] sm:$0xff]
    %v149 = vld [vmem:[#allocation4 + $0x370] sm:$0xff]
    %v150 = vld [vmem:[#allocation4 + $0x378] sm:$0xff]
    %v151 = vld [vmem:[#allocation4 + $0x380] sm:$0xff]
    %v152 = vld [vmem:[#allocation4 + $0x388] sm:$0xff]
    %v153 = vld [vmem:[#allocation4 + $0x390] sm:$0xff]
    %v154 = vld [vmem:[#allocation4 + $0x398] sm:$0xff]
    %v155 = vld [vmem:[#allocation4 + $0x3a0] sm:$0xff]
    %v156 = vld [vmem:[#allocation4 + $0x3a8] sm:$0xff]
    %v157 = vld [vmem:[#allocation4 + $0x3b0] sm:$0xff]
    %v158 = vld [vmem:[#allocation4 + $0x3b8] sm:$0xff]
    %v159 = vld [vmem:[#allocation4 + $0x3c0] sm:$0xff]
    %v160 = vld [vmem:[#allocation4 + $0x3c8] sm:$0xff]
    %v161 = vld [vmem:[#allocation4 + $0x3d0] sm:$0xff]
    %v162 = vld [vmem:[#allocation4 + $0x3d8] sm:$0xff]
    %v163 = vld [vmem:[#allocation4 + $0x3e0] sm:$0xff]
    %v164 = vld [vmem:[#allocation4 + $0x3e8] sm:$0xff]
    %v165 = vld [vmem:[#allocation4 + $0x3f0] sm:$0xff]
    %v166 = vld [vmem:[#allocation4 + $0x3f8] sm:$0xff]
    %v167 = vld [vmem:[#allocation4 + $0x400] sm:$0xff]
    %v168 = vld [vmem:[#allocation4 + $0x408] sm:$0xff]
    %v169 = vld [vmem:[#allocation4 + $0x410] sm:$0xff]
    %v170 = vld [vmem:[#allocation4 + $0x418] sm:$0xff]
    %v171 = vld [vmem:[#allocation4 + $0x420] sm:$0xff]
    %v172 = vld [vmem:[#allocation4 + $0x428] sm:$0xff]
    %v173 = vld [vmem:[#allocation4 + $0x430] sm:$0xff]
    %v174 = vld [vmem:[#allocation4 + $0x438] sm:$0xff]
    %v175 = vld [vmem:[#allocation4 + $0x440] sm:$0xff]
    %v176 = vld [vmem:[#allocation4 + $0x448] sm:$0xff]
    %v177 = vld [vmem:[#allocation4 + $0x450] sm:$0xff]
    %v178 = vld [vmem:[#allocation4 + $0x458] sm:$0xff]
    %v179 = vld [vmem:[#allocation4 + $0x460] sm:$0xff]
    %v180 = vld [vmem:[#allocation4 + $0x468] sm:$0xff]
    %v181 = vld [vmem:[#allocation4 + $0x470] sm:$0xff]
    %v182 = vld [vmem:[#allocation4 + $0x478] sm:$0xff]
    %v183 = vld [vmem:[#allocation4 + $0x480] sm:$0xff]
    %v184 = vld [vmem:[#allocation4 + $0x488] sm:$0xff]
    %v185 = vld [vmem:[#allocation4 + $0x490] sm:$0xff]
    %v186 = vld [vmem:[#allocation4 + $0x498] sm:$0xff]
    %v187 = vld [vmem:[#allocation4 + $0x4a0] sm:$0xff]
    %v188 = vld [vmem:[#allocation4 + $0x4a8] sm:$0xff]
    %v189 = vld [vmem:[#allocation4 + $0x4b0] sm:$0xff]
    %v190 = vld [vmem:[#allocation4 + $0x4b8] sm:$0xff]
    %v191 = vld [vmem:[#allocation4 + $0x4c0] sm:$0xff]
    %v192 = vld [vmem:[#allocation4 + $0x4c8] sm:$0xff]
    %v193 = vld [vmem:[#allocation4 + $0x4d0] sm:$0xff]
    %v194 = vld [vmem:[#allocation4 + $0x4d8] sm:$0xff]
    %v195 = vld [vmem:[#allocation4 + $0x4e0] sm:$0xff]
    %v196 = vld [vmem:[#allocation4 + $0x4e8] sm:$0xff]
    %v197 = vld [vmem:[#allocation4 + $0x4f0] sm:$0xff]
    %v198 = vld [vmem:[#allocation4 + $0x4f8] sm:$0xff]
    %v199 = vld [vmem:[#allocation4 + $0x500] sm:$0xff]
    %v200 = vld [vmem:[#allocation4 + $0x508] sm:$0xff]
    %v201 = vld [vmem:[#allocation4 + $0x510] sm:$0xff]
    %v202 = vld [vmem:[#allocation4 + $0x518] sm:$0xff]
    %v203 = vld [vmem:[#allocation4 + $0x520] sm:$0xff]
    %v204 = vld [vmem:[#allocation4 + $0x528] sm:$0xff]
    %v205 = vld [vmem:[#allocation4 + $0x530] sm:$0xff]
    %v206 = vld [vmem:[#allocation4 + $0x538] sm:$0xff]
    %v207 = vld [vmem:[#allocation4 + $0x540] sm:$0xff]
    %v208 = vld [vmem:[#allocation4 + $0x548] sm:$0xff]
    %v209 = vld [vmem:[#allocation4 + $0x550] sm:$0xff]
    %v210 = vld [vmem:[#allocation4 + $0x558] sm:$0xff]
    %v211 = vld [vmem:[#allocation4 + $0x560] sm:$0xff]
    %v212 = vld [vmem:[#allocation4 + $0x568] sm:$0xff]
    %v213 = vld [vmem:[#allocation4 + $0x570] sm:$0xff]
    %v214 = vld [vmem:[#allocation4 + $0x578] sm:$0xff]
    %v215 = vld [vmem:[#allocation4 + $0x580] sm:$0xff]
    %v216 = vld [vmem:[#allocation4 + $0x588] sm:$0xff]
    %v217 = vld [vmem:[#allocation4 + $0x590] sm:$0xff]
    %v218 = vld [vmem:[#allocation4 + $0x598] sm:$0xff]
    %v219 = vld [vmem:[#allocation4 + $0x5a0] sm:$0xff]
    %v220 = vld [vmem:[#allocation4 + $0x5a8] sm:$0xff]
    %v221 = vld [vmem:[#allocation4 + $0x5b0] sm:$0xff]
    %v222 = vld [vmem:[#allocation4 + $0x5b8] sm:$0xff]
    %v223 = vld [vmem:[#allocation4 + $0x5c0] sm:$0xff]
    %v224 = vld [vmem:[#allocation4 + $0x5c8] sm:$0xff]
    %v225 = vld [vmem:[#allocation4 + $0x5d0] sm:$0xff]
    %v226 = vld [vmem:[#allocation4 + $0x5d8] sm:$0xff]
    %v227 = vld [vmem:[#allocation4 + $0x5e0] sm:$0xff]
    %v228 = vld [vmem:[#allocation4 + $0x5e8] sm:$0xff]
    %v229 = vld [vmem:[#allocation4 + $0x5f0] sm:$0xff]
    %v230 = vld [vmem:[#allocation4 + $0x5f8] sm:$0xff]
    %v231 = vld [vmem:[#allocation4 + $0x600] sm:$0xff]
    %v232 = vld [vmem:[#allocation4 + $0x608] sm:$0xff]
    %v233 = vld [vmem:[#allocation4 + $0x610] sm:$0xff]
    %v234 = vld [vmem:[#allocation4 + $0x618] sm:$0xff]
    %v235 = vld [vmem:[#allocation4 + $0x620] sm:$0xff]
    %v236 = vld [vmem:[#allocation4 + $0x628] sm:$0xff]
    %v237 = vld [vmem:[#allocation4 + $0x630] sm:$0xff]
    %v238 = vld [vmem:[#allocation4 + $0x638] sm:$0xff]
    %v239 = vld [vmem:[#allocation4 + $0x640] sm:$0xff]
    %v240 = vld [vmem:[#allocation4 + $0x648] sm:$0xff]
    %v241 = vld [vmem:[#allocation4 + $0x650] sm:$0xff]
    %v242 = vld [vmem:[#allocation4 + $0x658] sm:$0xff]
    %v243 = vld [vmem:[#allocation4 + $0x660] sm:$0xff]
    %v244 = vld [vmem:[#allocation4 + $0x668] sm:$0xff]
    %v245 = vld [vmem:[#allocation4 + $0x670] sm:$0xff]
    %v246 = vld [vmem:[#allocation4 + $0x678] sm:$0xff]
    %v247 = vld [vmem:[#allocation4 + $0x680] sm:$0xff]
    %v248 = vld [vmem:[#allocation4 + $0x688] sm:$0xff]
    %v249 = vld [vmem:[#allocation4 + $0x690] sm:$0xff]
    %v250 = vld [vmem:[#allocation4 + $0x698] sm:$0xff]
    %v251 = vld [vmem:[#allocation4 + $0x6a0] sm:$0xff]
    %v252 = vld [vmem:[#allocation4 + $0x6a8] sm:$0xff]
    %v253 = vld [vmem:[#allocation4 + $0x6b0] sm:$0xff]
    %v254 = vld [vmem:[#allocation4 + $0x6b8] sm:$0xff]
    %v255 = vld [vmem:[#allocation4 + $0x6c0] sm:$0xff]
    %v256 = vld [vmem:[#allocation4 + $0x6c8] sm:$0xff]
    %v257 = vld [vmem:[#allocation4 + $0x6d0] sm:$0xff]
    %v258 = vld [vmem:[#allocation4 + $0x6d8] sm:$0xff]
    %v259 = vld [vmem:[#allocation4 + $0x6e0] sm:$0xff]
    %v260 = vld [vmem:[#allocation4 + $0x6e8] sm:$0xff]
    %v261 = vld [vmem:[#allocation4 + $0x6f0] sm:$0xff]
    %v262 = vld [vmem:[#allocation4 + $0x6f8] sm:$0xff]
    %v263 = vld [vmem:[#allocation4 + $0x700] sm:$0xf]
    %v264 = vld [vmem:[#allocation4 + $0x708] sm:$0xf]
    %v267 = vcombine.high %v37, %v37
    %v269 = vunpack.c.l.s4 1983009808
    %v270 = vunpack.c.0.s8 %v269
    %v271 = vlaneseq
    %v272 = vshrl.u32 %v271, 7
    %v273 = vsub.s32 %v270, %v272
    %v274 = vrot.slane %v37, %v273
    %v276 = vunpack.c.l.s4 1983009808
    %v277 = vunpack.c.0.s8 %v276
    %v278 = vlaneseq
    %v279 = vshrl.u32 %v278, 7
    %v280 = vsub.s32 %v277, %v279
    %v281 = vrot.slane %v267, %v280
    %v282 = vcombine.high %v274, %v274
    %v283 = vcombine.high %v281, %v281
    %v284 = vcombine.high %v38, %v38
    %v286 = vunpack.c.l.s4 1983009808
    %v287 = vunpack.c.0.s8 %v286
    %v288 = vlaneseq
    %v289 = vshrl.u32 %v288, 7
    %v290 = vsub.s32 %v287, %v289
    %v291 = vrot.slane %v38, %v290
    %v293 = vunpack.c.l.s4 1983009808
    %v294 = vunpack.c.0.s8 %v293
    %v295 = vlaneseq
    %v296 = vshrl.u32 %v295, 7
    %v297 = vsub.s32 %v294, %v296
    %v298 = vrot.slane %v284, %v297
    %v299 = vcombine.high %v291, %v291
    %v300 = vcombine.high %v298, %v298
    %vm308 = vcmask 31744
    %v309 = vsel %vm308, %v300, 0
    %vm311 = vcmask 1043456
    %v313 = vsel %vm311, %v263, 0
    %v316 = vsel %vm311, %v264, 0
    %318 = vmatprep.subr.mxu0 %v40
    %319 = vmatpush1.msra.mxu0 %v39
    %320 = vmatprep.subr.mxu0 %v42
    %321 = vmatpush1.msra.mxu0 %v41
    %322 = vmatprep.subr.mxu0 %v44
    %323 = vmatpush1.msra.mxu0 %v43
    %324 = vmatprep.subr.mxu0 %v46
    %325 = vmatpush1.msra.mxu0 %v45
    %326 = vmatprep.subr.mxu0 %v48
    %327 = vmatpush1.msra.mxu0 %v47
    %328 = vmatprep.subr.mxu0 %v50
    %329 = vmatpush1.msra.mxu0 %v49
    %330 = vmatprep.subr.mxu0 %v52
    %331 = vmatpush1.msra.mxu0 %v51
    %332 = vmatprep.subr.mxu0 %v54
    %333 = vmatpush1.msra.mxu0 %v53
    %334 = vmatprep.subr.mxu0 %v56
    %335 = vmatpush1.msra.mxu0 %v55
    %336 = vmatprep.subr.mxu0 %v58
    %337 = vmatpush1.msra.mxu0 %v57
    %338 = vmatprep.subr.mxu0 %v60
    %339 = vmatpush1.msra.mxu0 %v59
    %340 = vmatprep.subr.mxu0 %v62
    %341 = vmatpush1.msra.mxu0 %v61
    %342 = vmatprep.subr.mxu0 %v64
    %343 = vmatpush1.msra.mxu0 %v63
    %344 = vmatprep.subr.mxu0 %v66
    %345 = vmatpush1.msra.mxu0 %v65
    %346 = vmatprep.subr.mxu0 %v68
    %347 = vmatpush1.msra.mxu0 %v67
    %348 = vmatprep.subr.mxu0 %v70
    %349 = vmatpush1.msra.mxu0 %v69
    %350 = vmatprep.subr.mxu0 %v72
    %351 = vmatpush1.msra.mxu0 %v71
    %352 = vmatprep.subr.mxu0 %v74
    %353 = vmatpush1.msra.mxu0 %v73
    %354 = vmatprep.subr.mxu0 %v76
    %355 = vmatpush1.msra.mxu0 %v75
    %356 = vmatprep.subr.mxu0 %v78
    %357 = vmatpush1.msra.mxu0 %v77
    %358 = vmatprep.subr.mxu0 %v80
    %359 = vmatpush1.msra.mxu0 %v79
    %360 = vmatprep.subr.mxu0 %v82
    %361 = vmatpush1.msra.mxu0 %v81
    %362 = vmatprep.subr.mxu0 %v84
    %363 = vmatpush1.msra.mxu0 %v83
    %364 = vmatprep.subr.mxu0 %v86
    %365 = vmatpush1.msra.mxu0 %v85
    %366 = vmatprep.subr.mxu0 %v88
    %367 = vmatpush1.msra.mxu0 %v87
    %368 = vmatprep.subr.mxu0 %v90
    %369 = vmatpush1.msra.mxu0 %v89
    %370 = vmatprep.subr.mxu0 %v92
    %371 = vmatpush1.msra.mxu0 %v91
    %372 = vmatprep.subr.mxu0 %v94
    %373 = vmatpush1.msra.mxu0 %v93
    %374 = vmatprep.subr.mxu0 %v96
    %375 = vmatpush1.msra.mxu0 %v95
    %376 = vmatprep.subr.mxu0 %v98
    %377 = vmatpush1.msra.mxu0 %v97
    %378 = vmatprep.subr.mxu0 %v100
    %379 = vmatpush1.msra.mxu0 %v99
    %380 = vmatprep.subr.mxu0 %v102
    %381 = vmatpush1.msra.mxu0 %v101
    %382 = vmatprep.mubr.f32.mxu0 %v282
    %383 = vmatmul.mubr.f32.gmra.mrb[0].mxu0 %v274
    %v384 = vpop.f32.mrb[0].mxu0
    %v385 = vadd.f32 0.0, %v384
    %v386 = vpop.f32.mrb[0].mxu0
    %v387 = vadd.f32 0.0, %v386
    %388 = vdwg.mxu0
    %389 = vmatprep.subr.mxu0 %v104
    %390 = vmatpush1.msra.mxu0 %v103
    %391 = vmatprep.subr.mxu0 %v106
    %392 = vmatpush1.msra.mxu0 %v105
    %393 = vmatprep.subr.mxu0 %v108
    %394 = vmatpush1.msra.mxu0 %v107
    %395 = vmatprep.subr.mxu0 %v110
    %396 = vmatpush1.msra.mxu0 %v109
    %397 = vmatprep.subr.mxu0 %v112
    %398 = vmatpush1.msra.mxu0 %v111
    %399 = vmatprep.subr.mxu0 %v114
    %400 = vmatpush1.msra.mxu0 %v113
    %401 = vmatprep.subr.mxu0 %v116
    %402 = vmatpush1.msra.mxu0 %v115
    %403 = vmatprep.subr.mxu0 %v118
    %404 = vmatpush1.msra.mxu0 %v117
    %405 = vmatprep.subr.mxu0 %v120
    %406 = vmatpush1.msra.mxu0 %v119
    %407 = vmatprep.subr.mxu0 %v122
    %408 = vmatpush1.msra.mxu0 %v121
    %409 = vmatprep.subr.mxu0 %v124
    %410 = vmatpush1.msra.mxu0 %v123
    %411 = vmatprep.subr.mxu0 %v126
    %412 = vmatpush1.msra.mxu0 %v125
    %413 = vmatprep.subr.mxu0 %v128
    %414 = vmatpush1.msra.mxu0 %v127
    %415 = vmatprep.subr.mxu0 %v130
    %416 = vmatpush1.msra.mxu0 %v129
    %417 = vmatprep.subr.mxu0 %v132
    %418 = vmatpush1.msra.mxu0 %v131
    %419 = vmatprep.subr.mxu0 %v134
    %420 = vmatpush1.msra.mxu0 %v133
    %421 = vmatprep.subr.mxu0 %v136
    %422 = vmatpush1.msra.mxu0 %v135
    %423 = vmatprep.subr.mxu0 %v138
    %424 = vmatpush1.msra.mxu0 %v137
    %425 = vmatprep.subr.mxu0 %v140
    %426 = vmatpush1.msra.mxu0 %v139
    %427 = vmatprep.subr.mxu0 %v142
    %428 = vmatpush1.msra.mxu0 %v141
    %429 = vmatprep.subr.mxu0 %v144
    %430 = vmatpush1.msra.mxu0 %v143
    %431 = vmatprep.subr.mxu0 %v146
    %432 = vmatpush1.msra.mxu0 %v145
    %433 = vmatprep.subr.mxu0 %v148
    %434 = vmatpush1.msra.mxu0 %v147
    %435 = vmatprep.subr.mxu0 %v150
    %436 = vmatpush1.msra.mxu0 %v149
    %437 = vmatprep.subr.mxu0 %v152
    %438 = vmatpush1.msra.mxu0 %v151
    %439 = vmatprep.subr.mxu0 %v154
    %440 = vmatpush1.msra.mxu0 %v153
    %441 = vmatprep.subr.mxu0 %v156
    %442 = vmatpush1.msra.mxu0 %v155
    %443 = vmatprep.subr.mxu0 %v158
    %444 = vmatpush1.msra.mxu0 %v157
    %445 = vmatprep.subr.mxu0 %v160
    %446 = vmatpush1.msra.mxu0 %v159
    %447 = vmatprep.subr.mxu0 %v162
    %448 = vmatpush1.msra.mxu0 %v161
    %449 = vmatprep.subr.mxu0 %v164
    %450 = vmatpush1.msra.mxu0 %v163
    %451 = vmatprep.subr.mxu0 %v166
    %452 = vmatpush1.msra.mxu0 %v165
    %453 = vmatprep.mubr.f32.mxu0 %v283
    %454 = vmatmul.mubr.f32.gmra.mrb[0].mxu0 %v281
    %v455 = vpop.f32.mrb[0].mxu0
    %v456 = vadd.f32 %v385, %v455
    %v457 = vpop.f32.mrb[0].mxu0
    %v458 = vadd.f32 %v387, %v457
    %459 = vdwg.mxu0
    %460 = vmatprep.subr.mxu0 %v168
    %461 = vmatpush1.msra.mxu0 %v167
    %462 = vmatprep.subr.mxu0 %v170
    %463 = vmatpush1.msra.mxu0 %v169
    %464 = vmatprep.subr.mxu0 %v172
    %465 = vmatpush1.msra.mxu0 %v171
    %466 = vmatprep.subr.mxu0 %v174
    %467 = vmatpush1.msra.mxu0 %v173
    %468 = vmatprep.subr.mxu0 %v176
    %469 = vmatpush1.msra.mxu0 %v175
    %470 = vmatprep.subr.mxu0 %v178
    %471 = vmatpush1.msra.mxu0 %v177
    %472 = vmatprep.subr.mxu0 %v180
    %473 = vmatpush1.msra.mxu0 %v179
    %474 = vmatprep.subr.mxu0 %v182
    %475 = vmatpush1.msra.mxu0 %v181
    %476 = vmatprep.subr.mxu0 %v184
    %477 = vmatpush1.msra.mxu0 %v183
    %478 = vmatprep.subr.mxu0 %v186
    %479 = vmatpush1.msra.mxu0 %v185
    %480 = vmatprep.subr.mxu0 %v188
    %481 = vmatpush1.msra.mxu0 %v187
    %482 = vmatprep.subr.mxu0 %v190
    %483 = vmatpush1.msra.mxu0 %v189
    %484 = vmatprep.subr.mxu0 %v192
    %485 = vmatpush1.msra.mxu0 %v191
    %486 = vmatprep.subr.mxu0 %v194
    %487 = vmatpush1.msra.mxu0 %v193
    %488 = vmatprep.subr.mxu0 %v196
    %489 = vmatpush1.msra.mxu0 %v195
    %490 = vmatprep.subr.mxu0 %v198
    %491 = vmatpush1.msra.mxu0 %v197
    %492 = vmatprep.subr.mxu0 %v200
    %493 = vmatpush1.msra.mxu0 %v199
    %494 = vmatprep.subr.mxu0 %v202
    %495 = vmatpush1.msra.mxu0 %v201
    %496 = vmatprep.subr.mxu0 %v204
    %497 = vmatpush1.msra.mxu0 %v203
    %498 = vmatprep.subr.mxu0 %v206
    %499 = vmatpush1.msra.mxu0 %v205
    %500 = vmatprep.subr.mxu0 %v208
    %501 = vmatpush1.msra.mxu0 %v207
    %502 = vmatprep.subr.mxu0 %v210
    %503 = vmatpush1.msra.mxu0 %v209
    %504 = vmatprep.subr.mxu0 %v212
    %505 = vmatpush1.msra.mxu0 %v211
    %506 = vmatprep.subr.mxu0 %v214
    %507 = vmatpush1.msra.mxu0 %v213
    %508 = vmatprep.subr.mxu0 %v216
    %509 = vmatpush1.msra.mxu0 %v215
    %510 = vmatprep.subr.mxu0 %v218
    %511 = vmatpush1.msra.mxu0 %v217
    %512 = vmatprep.subr.mxu0 %v220
    %513 = vmatpush1.msra.mxu0 %v219
    %514 = vmatprep.subr.mxu0 %v222
    %515 = vmatpush1.msra.mxu0 %v221
    %516 = vmatprep.subr.mxu0 %v224
    %517 = vmatpush1.msra.mxu0 %v223
    %518 = vmatprep.subr.mxu0 %v226
    %519 = vmatpush1.msra.mxu0 %v225
    %520 = vmatprep.subr.mxu0 %v228
    %521 = vmatpush1.msra.mxu0 %v227
    %522 = vmatprep.subr.mxu0 %v230
    %523 = vmatpush1.msra.mxu0 %v229
    %524 = vmatprep.mubr.f32.mxu0 %v299
    %525 = vmatmul.mubr.f32.gmra.mrb[0].mxu0 %v291
    %v526 = vpop.f32.mrb[0].mxu0
    %v527 = vadd.f32 %v456, %v526
    %v528 = vpop.f32.mrb[0].mxu0
    %v529 = vadd.f32 %v458, %v528
    %530 = vdwg.mxu0
    %531 = vmatprep.subr.mxu0 %v232
    %532 = vmatpush1.msra.mxu0 %v231
    %533 = vmatprep.subr.mxu0 %v234
    %534 = vmatpush1.msra.mxu0 %v233
    %535 = vmatprep.subr.mxu0 %v236
    %536 = vmatpush1.msra.mxu0 %v235
    %537 = vmatprep.subr.mxu0 %v238
    %538 = vmatpush1.msra.mxu0 %v237
    %539 = vmatprep.subr.mxu0 %v240
    %540 = vmatpush1.msra.mxu0 %v239
    %541 = vmatprep.subr.mxu0 %v242
    %542 = vmatpush1.msra.mxu0 %v241
    %543 = vmatprep.subr.mxu0 %v244
    %544 = vmatpush1.msra.mxu0 %v243
    %545 = vmatprep.subr.mxu0 %v246
    %546 = vmatpush1.msra.mxu0 %v245
    %547 = vmatprep.subr.mxu0 %v248
    %548 = vmatpush1.msra.mxu0 %v247
    %549 = vmatprep.subr.mxu0 %v250
    %550 = vmatpush1.msra.mxu0 %v249
    %551 = vmatprep.subr.mxu0 %v252
    %552 = vmatpush1.msra.mxu0 %v251
    %553 = vmatprep.subr.mxu0 %v254
    %554 = vmatpush1.msra.mxu0 %v253
    %555 = vmatprep.subr.mxu0 %v256
    %556 = vmatpush1.msra.mxu0 %v255
    %557 = vmatprep.subr.mxu0 %v258
    %558 = vmatpush1.msra.mxu0 %v257
    %559 = vmatprep.subr.mxu0 %v260
    %560 = vmatpush1.msra.mxu0 %v259
    %561 = vmatprep.subr.mxu0 %v262
    %562 = vmatpush1.msra.mxu0 %v261
    %563 = vmatprep.subr.mxu0 %v316
    %564 = vmatpush1.msra.mxu0 %v313
    %565 = vmatprep.subr.mxu0 0.0
    %566 = vmatpush1.msra.mxu0 0.0
    %567 = vmatprep.subr.mxu0 0.0
    %568 = vmatpush1.msra.mxu0 0.0
    %569 = vmatprep.subr.mxu0 0.0
    %570 = vmatpush1.msra.mxu0 0.0
    %571 = vmatprep.subr.mxu0 0.0
    %572 = vmatpush1.msra.mxu0 0.0
    %573 = vmatprep.subr.mxu0 0.0
    %574 = vmatpush1.msra.mxu0 0.0
    %575 = vmatprep.subr.mxu0 0.0
    %576 = vmatpush1.msra.mxu0 0.0
    %577 = vmatprep.subr.mxu0 0.0
    %578 = vmatpush1.msra.mxu0 0.0
    %579 = vmatprep.subr.mxu0 0.0
    %580 = vmatpush1.msra.mxu0 0.0
    %581 = vmatprep.subr.mxu0 0.0
    %582 = vmatpush1.msra.mxu0 0.0
    %583 = vmatprep.subr.mxu0 0.0
    %584 = vmatpush1.msra.mxu0 0.0
    %585 = vmatprep.subr.mxu0 0.0
    %586 = vmatpush1.msra.mxu0 0.0
    %587 = vmatprep.subr.mxu0 0.0
    %588 = vmatpush1.msra.mxu0 0.0
    %589 = vmatprep.subr.mxu0 0.0
    %590 = vmatpush1.msra.mxu0 0.0
    %591 = vmatprep.subr.mxu0 0.0
    %592 = vmatpush1.msra.mxu0 0.0
    %593 = vmatprep.subr.mxu0 0.0
    %594 = vmatpush1.msra.mxu0 0.0
    %595 = vmatprep.mubr.f32.mxu0 %v309
    %596 = vmatmul.mubr.f32.gmra.mrb[0].mxu0 %v298
    %v597 = vpop.f32.mrb[0].mxu0
    %v598 = vadd.f32 %v527, %v597
    %v599 = vpop.f32.mrb[0].mxu0
    %v600 = vadd.f32 %v529, %v599
    %601 = vdwg.mxu0
    %v602 = vmax.f32 %v598, %v600
    %vm603 = vcmask 1041408
    %v604 = vsel %vm603, %v602, -inf
    %605 = vmax.xlane.f32.xlu0 %v604
    %v606 = vpop.xlane.xlu0 %605
    %vm607 = vcmask 1024
    %608 = vst.msk [vmem:[%s2] sm:$0x3] %vm607, %v606
    // Predicated region
    $region18: #{tpu_custom_call.1} parent=1 // pred_check
      _
    $region19: #{tpu_custom_call.1} parent=1 // pred_check_branch
      %610 = sbr.rel (0) target = $region21
    $region20: #{tpu_custom_call.1} parent=1 // pred_region
      _
    $region21: #{tpu_custom_call.1} parent=1 // pred_fallthru
      _
    // Predicated region
    $region22: #{tpu_custom_call.1} parent=1 // pred_check
      _
    $region23: #{tpu_custom_call.1} parent=1 // pred_check_branch
      %612 = sbr.rel (0) target = $region25
    $region24: #{tpu_custom_call.1} parent=1 // pred_region
      _
    $region25: #{tpu_custom_call.1} parent=1 // pred_fallthru
      _
    %613 = vsyncpa [#allocation3], 1
    %614 = vsyncpa [#allocation5], 1

</llo_original>
